<compile_context>
chip_gen: v7x
topology: tpu7x:2x2x1
jax: 0.10.0
libtpu: 0.0.40
codegen_flags: <defaults>
</compile_context>

<pallas_src>
import jax
import jax.numpy as jnp
from jax import lax
from jax.experimental import pallas as pl
from jax.experimental.pallas import tpu as pltpu


_PALLAS_MIN_ELEMENTS = 1 << 19   # below this, fused XLA beats kernel launch overhead
_SCORES_TILE_BYTES = 4 << 20     # target per-buffer VMEM footprint of a scores tile


def _round_up(x: int, m: int) -> int:
    return ((x + m - 1) // m) * m


def _sublane_multiple(dtype) -> int:
    # f32 -> 8, bf16 -> 16, int8/fp8 -> 32 (packed dtypes pack along sublanes)
    itemsize = jnp.dtype(dtype).itemsize
    return max(8, 32 // max(itemsize, 1))


def _score_loss_kernel(last_blk_ref, max_len_ref, min_len_ref,
                       lengths_ref, scores_ref, rowmax_ref):
    """Running row-max over N tiles; the f32 output block is the accumulator."""
    del last_blk_ref  # only consumed by the scores index_map (DMA clamping)
    i = pl.program_id(0)
    n = pl.program_id(1)
    TB, TN = scores_ref.shape

    @pl.when(n == 0)
    def _init():
        rowmax_ref[...] = jnp.full(rowmax_ref.shape, -jnp.inf, dtype=jnp.float32)

    # Scalar-core predicates straight from prefetched SMEM (no vector reduce).
    max_len = max_len_ref[i]
    min_len = min_len_ref[i]
    need = n * TN < max_len                 # any valid column in this tile?
    full = min_len >= (n + 1) * TN          # every row fully covers this tile?

    @pl.when(jnp.logical_and(need, full))
    def _fast():
        # Fully-valid tile: plain row max in the input dtype (exact), then a
        # cheap (TB,1) upcast for the f32 accumulator.
        tile_max = jnp.max(scores_ref[...], axis=1, keepdims=True)
        rowmax_ref[...] = jnp.maximum(rowmax_ref[...], tile_max.astype(jnp.float32))

    @pl.when(jnp.logical_and(need, jnp.logical_not(full)))
    def _slow():
        # Boundary tile: mask out-of-length / out-of-bounds (ragged edge) lanes.
        scores = scores_ref[...]
        col = lax.broadcasted_iota(jnp.int32, scores.shape, 1) + n * TN
        masked = jnp.where(col < lengths_ref[...], scores, -jnp.inf)
        tile_max = jnp.max(masked, axis=1, keepdims=True)
        rowmax_ref[...] = jnp.maximum(rowmax_ref[...], tile_max.astype(jnp.float32))


def _score_loss_pallas(scores, lengths, coefficient, block_b=None, block_n=None):
    B, N = scores.shape
    dtype = scores.dtype
    itemsize = jnp.dtype(dtype).itemsize
    sub = _sublane_multiple(dtype)

    # ---- tile selection ----------------------------------------------------
    if block_b is not None:
        TB = _round_up(block_b, sub)
    else:
        # Prefer Gb >= 2 so the "parallel" B axis can shard across both v7x
        # TensorCores; harmless (slightly smaller tiles) on v5e/v6e.
        TB = min(_round_up(pl.cdiv(B, 2), sub), 512, _round_up(B, sub))
    if block_n is not None:
        TN = _round_up(block_n, 128)
    else:
        budget_cols = max((_SCORES_TILE_BYTES // (TB * itemsize)) // 128 * 128, 128)
        TN = min(_round_up(N, 128), budget_cols, 8192)

    Gb = pl.cdiv(B, TB)
    Gn = pl.cdiv(N, TN)
    B_pad = Gb * TB

    # ---- tiny host-side metadata (scores themselves are NOT padded/copied) --
    lengths_i32 = lengths.astype(jnp.int32)
    lengths_pad = jnp.pad(lengths_i32, (0, B_pad - B))        # padded rows -> length 0
    lengths_col = lengths_pad.reshape(B_pad, 1)

    per_tile = lengths_pad.reshape(Gb, TB)
    tile_max_len = jnp.max(per_tile, axis=1).astype(jnp.int32)          # (Gb,)
    tile_min_len = jnp.min(per_tile, axis=1).astype(jnp.int32)          # (Gb,)
    last_blk = jnp.clip((tile_max_len - 1) // TN, 0, Gn - 1).astype(jnp.int32)

    # ---- VMEM budget: double-buffered scores tile + small (TB,1) streams ----
    vmem_est = 2 * TB * TN * itemsize + 4 * TB * 128 * 4 + (2 << 20)
    vmem_limit = int(min(max(vmem_est + (4 << 20), 24 << 20), 48 << 20))

    rowmax = pl.pallas_call(
        _score_loss_kernel,
        out_shape=jax.ShapeDtypeStruct((B_pad, 1), jnp.float32),
        grid_spec=pltpu.PrefetchScalarGridSpec(
            num_scalar_prefetch=3,
            grid=(Gb, Gn),
            in_specs=[
                # lengths column: resident across the N (reduction) axis.
                pl.BlockSpec((TB, 1), lambda i, n, lb, mx, mn: (i, 0)),
                # scores tile: clamp the N-block index so tiles past every
                # row's length repeat the previous block (zero HBM traffic).
                pl.BlockSpec((TB, TN),
                             lambda i, n, lb, mx, mn: (i, jnp.minimum(n, lb[i]))),
            ],
            out_specs=pl.BlockSpec((TB, 1), lambda i, n, lb, mx, mn: (i, 0)),
        ),
        compiler_params=pltpu.CompilerParams(
            dimension_semantics=("parallel", "arbitrary"),
            vmem_limit_bytes=vmem_limit),
    )(last_blk, tile_max_len, tile_min_len, lengths_col, scores)

    # Trailing mask / sum / divide / scale: free in the host-side JAX graph.
    row_max = rowmax[:B, 0]
    valid = lengths_i32 > 0
    total = jnp.sum(jnp.where(valid, row_max, 0.0))
    count = jnp.sum(valid.astype(jnp.float32))
    loss = jnp.float32(coefficient) * total / jnp.maximum(count, 1.0)
    # NOTE: PyTorch raises on an all-empty batch (0/0); return 0.0 instead of NaN.
    return jnp.where(count > 0, loss, jnp.float32(0.0))


def _score_loss_jnp(scores, lengths, coefficient):
    """Pure-JAX fallback (identical math), fuses into the surrounding graph."""
    scores = scores.astype(jnp.float32)
    _, N = scores.shape
    col = jnp.arange(N, dtype=jnp.int32)[None, :]
    valid = col < lengths.astype(jnp.int32)[:, None]
    masked = jnp.where(valid, scores, -jnp.inf)
    row_max = jnp.max(masked, axis=1)
    valid_row = lengths > 0
    total = jnp.sum(jnp.where(valid_row, row_max, 0.0))
    count = jnp.sum(valid_row.astype(jnp.float32))
    loss = jnp.float32(coefficient) * total / jnp.maximum(count, 1.0)
    return jnp.where(count > 0, loss, jnp.float32(0.0))


def score_loss(scores, lengths, coefficient=1.0, *, force_pallas=False,
               block_b=None, block_n=None):
    """scores: [B, N_max] float (padded); lengths: [B] int32."""
    if force_pallas or scores.size >= _PALLAS_MIN_ELEMENTS:
        return _score_loss_pallas(scores, lengths, coefficient,
                                  block_b=block_b, block_n=block_n)
    return _score_loss_jnp(scores, lengths, coefficient)


if __name__ == "__main__":
    key = jax.random.PRNGKey(0)
    k1, k2, k3 = jax.random.split(key, 3)

    # ---- Test 1: tiny f32 input -> pure-JAX fallback path. ------------------
    B1, N1 = 4, 16
    scores1 = jax.random.uniform(k1, (B1, N1), dtype=jnp.float32)
    lengths1 = jnp.array([5, 0, 16, 3], dtype=jnp.int32)
    coef1 = 2.0
    loss1 = score_loss(scores1, lengths1, coefficient=coef1)
    jax.block_until_ready(loss1)

    ref_total, ref_count = 0.0, 0   # Python loop mirroring the PyTorch module
    for b in range(B1):
        nb = int(lengths1[b])
        if nb > 0:
            ref_total += float(jnp.max(scores1[b, :nb]))
            ref_count += 1
    ref1 = coef1 * ref_total / ref_count
    assert abs(float(loss1) - ref1) < 1e-5, (float(loss1), ref1)

    # ---- Test 2: Pallas path, bf16, ragged B and N edges, multi-tile N grid
    #      (exercises edge-block masking, SMEM-driven skip and DMA clamping). --
    B2, N2 = 20, 300
    k2a, k2b = jax.random.split(k2)
    scores2 = jax.random.uniform(k2a, (B2, N2), dtype=jnp.float32).astype(jnp.bfloat16)
    lengths2 = jax.random.randint(k2b, (B2,), 0, N2 + 1, dtype=jnp.int32)
    lengths2 = lengths2.at[0].set(N2)   # at least one full row
    lengths2 = lengths2.at[3].set(0)    # at least one empty row
    lengths2 = lengths2.at[7].set(5)    # a short row (exercises skipped tiles)
    coef2 = 0.5
    loss2 = score_loss(scores2, lengths2, coefficient=coef2,
                       force_pallas=True, block_b=16, block_n=128)
    jax.block_until_ready(loss2)
    ref2 = float(_score_loss_jnp(scores2, lengths2, coef2))
    assert abs(float(loss2) - ref2) < 1e-4 * max(1.0, abs(ref2)), (float(loss2), ref2)

    # ---- Test 3: Pallas path, default tiling, f32, all rows full
    #      (exercises the unmasked fast path and default TB/TN selection). -----
    B3, N3 = 16, 256
    scores3 = jax.random.uniform(k3, (B3, N3), dtype=jnp.float32)
    lengths3 = jnp.full((B3,), N3, dtype=jnp.int32)
    coef3 = 1.5
    loss3 = score_loss(scores3, lengths3, coefficient=coef3, force_pallas=True)
    jax.block_until_ready(loss3)
    ref3 = float(_score_loss_jnp(scores3, lengths3, coef3))
    assert abs(float(loss3) - ref3) < 1e-5 * max(1.0, abs(ref3)), (float(loss3), ref3)

    print("KERNEL_OK")
</pallas_src>

<mosaic_0001>
module attributes {stable_mosaic.version = 11 : i64} {
  func.func @_score_loss_kernel(%arg0: i32, %arg1: i32, %arg2: memref<2xi32, #tpu.memory_space<smem>>, %arg3: memref<2xi32, #tpu.memory_space<smem>>, %arg4: memref<2xi32, #tpu.memory_space<smem>>, %arg5: memref<16x1xi32, #tpu.memory_space<vmem>>, %arg6: memref<16x128xbf16, #tpu.memory_space<vmem>>, %arg7: memref<16x1xf32, #tpu.memory_space<vmem>>) attributes {dimension_semantics = [#tpu.dimension_semantics<parallel>, #tpu.dimension_semantics<arbitrary>], iteration_bounds = array<i64: 2, 3>, scalar_prefetch = 3 : i64, scratch_operands = 0 : i64, tpu.core_type = #tpu.core_type<tc>, window_params = [{transform_indices = @transform_0, window_bounds = array<i64: 16, 1>}, {transform_indices = @transform_1, window_bounds = array<i64: 16, 128>}, {transform_indices = @transform_2, window_bounds = array<i64: 16, 1>}]} {
    %c0_i32 = arith.constant 0 : i32
    %0 = arith.cmpi eq, %arg1, %c0_i32 : i32
    %1 = arith.extui %0 : i1 to i32
    %c0_i32_0 = arith.constant 0 : i32
    %2 = arith.cmpi ne, %1, %c0_i32_0 : i32
    scf.if %2 {
      %cst = arith.constant 0xFF800000 : f32
      %19 = vector.broadcast %cst : f32 to vector<16x1xf32>
      %c0 = arith.constant 0 : index
      %c0_4 = arith.constant 0 : index
      %20 = vector.load %arg7[%c0, %c0_4] : memref<16x1xf32, #tpu.memory_space<vmem>>, vector<16x1xf32>
      tpu.vector_store %arg7[%c0, %c0_4], %19 {strides = array<i32>} : memref<16x1xf32, #tpu.memory_space<vmem>>, vector<16x1xf32>,
    } else {
    }
    %3 = arith.index_cast %arg0 : i32 to index
    %4 = memref.load %arg3[%3] : memref<2xi32, #tpu.memory_space<smem>>
    %5 = arith.index_cast %arg0 : i32 to index
    %6 = memref.load %arg4[%5] : memref<2xi32, #tpu.memory_space<smem>>
    %c128_i32 = arith.constant 128 : i32
    %7 = arith.muli %arg1, %c128_i32 : i32
    %8 = arith.cmpi slt, %7, %4 : i32
    %c1_i32 = arith.constant 1 : i32
    %9 = arith.addi %arg1, %c1_i32 : i32
    %c128_i32_1 = arith.constant 128 : i32
    %10 = arith.muli %9, %c128_i32_1 : i32
    %11 = arith.cmpi sge, %6, %10 : i32
    %12 = arith.andi %8, %11 : i1
    %13 = arith.extui %12 : i1 to i32
    %c0_i32_2 = arith.constant 0 : i32
    %14 = arith.cmpi ne, %13, %c0_i32_2 : i32
    scf.if %14 {
      %c0 = arith.constant 0 : index
      %c0_4 = arith.constant 0 : index
      %19 = vector.load %arg6[%c0, %c0_4] : memref<16x128xbf16, #tpu.memory_space<vmem>>, vector<16x128xbf16>
      %cst = arith.constant dense<0xFF80> : vector<16xbf16>
      %20 = vector.multi_reduction <maximumf>, %19, %cst [1] : vector<16x128xbf16> to vector<16xbf16>
      %21 = vector.shape_cast %20 : vector<16xbf16> to vector<16x1xbf16>
      %c0_5 = arith.constant 0 : index
      %c0_6 = arith.constant 0 : index
      %22 = vector.load %arg7[%c0_5, %c0_6] : memref<16x1xf32, #tpu.memory_space<vmem>>, vector<16x1xf32>
      %23 = arith.extf %21 : vector<16x1xbf16> to vector<16x1xf32>
      %24 = arith.maximumf %22, %23 : vector<16x1xf32>
      %c0_7 = arith.constant 0 : index
      %c0_8 = arith.constant 0 : index
      %25 = vector.load %arg7[%c0_7, %c0_8] : memref<16x1xf32, #tpu.memory_space<vmem>>, vector<16x1xf32>
      tpu.vector_store %arg7[%c0_7, %c0_8], %24 {strides = array<i32>} : memref<16x1xf32, #tpu.memory_space<vmem>>, vector<16x1xf32>,
    } else {
    }
    %true = arith.constant true
    %15 = arith.xori %11, %true : i1
    %16 = arith.andi %8, %15 : i1
    %17 = arith.extui %16 : i1 to i32
    %c0_i32_3 = arith.constant 0 : i32
    %18 = arith.cmpi ne, %17, %c0_i32_3 : i32
    scf.if %18 {
      %c0 = arith.constant 0 : index
      %c0_4 = arith.constant 0 : index
      %19 = vector.load %arg6[%c0, %c0_4] : memref<16x128xbf16, #tpu.memory_space<vmem>>, vector<16x128xbf16>
      %20 = tpu.iota {dimensions = array<i32: 1>} : vector<16x128xi32>
      %c128_i32_5 = arith.constant 128 : i32
      %21 = arith.muli %arg1, %c128_i32_5 : i32
      %22 = vector.broadcast %21 : i32 to vector<16x128xi32>
      %23 = arith.addi %20, %22 : vector<16x128xi32>
      %c0_6 = arith.constant 0 : index
      %c0_7 = arith.constant 0 : index
      %24 = vector.load %arg5[%c0_6, %c0_7] : memref<16x1xi32, #tpu.memory_space<vmem>>, vector<16x1xi32>
      %25 = vector.broadcast %24 : vector<16x1xi32> to vector<16x128xi32>
      %26 = arith.cmpi slt, %23, %25 : vector<16x128xi32>
      %cst = arith.constant 0xFF800000 : f32
      %27 = arith.truncf %cst : f32 to bf16
      %28 = vector.broadcast %27 : bf16 to vector<16x128xbf16>
      %29 = arith.select %26, %19, %28 : vector<16x128xi1>, vector<16x128xbf16>
      %cst_8 = arith.constant dense<0xFF80> : vector<16xbf16>
      %30 = vector.multi_reduction <maximumf>, %29, %cst_8 [1] : vector<16x128xbf16> to vector<16xbf16>
      %31 = vector.shape_cast %30 : vector<16xbf16> to vector<16x1xbf16>
      %c0_9 = arith.constant 0 : index
      %c0_10 = arith.constant 0 : index
      %32 = vector.load %arg7[%c0_9, %c0_10] : memref<16x1xf32, #tpu.memory_space<vmem>>, vector<16x1xf32>
      %33 = arith.extf %31 : vector<16x1xbf16> to vector<16x1xf32>
      %34 = arith.maximumf %32, %33 : vector<16x1xf32>
      %c0_11 = arith.constant 0 : index
      %c0_12 = arith.constant 0 : index
      %35 = vector.load %arg7[%c0_11, %c0_12] : memref<16x1xf32, #tpu.memory_space<vmem>>, vector<16x1xf32>
      tpu.vector_store %arg7[%c0_11, %c0_12], %34 {strides = array<i32>} : memref<16x1xf32, #tpu.memory_space<vmem>>, vector<16x1xf32>,
    } else {
    }
    return
  }
  func.func @transform_0(%arg0: i32, %arg1: i32, %arg2: memref<2xi32, #tpu.memory_space<smem>>, %arg3: memref<2xi32, #tpu.memory_space<smem>>, %arg4: memref<2xi32, #tpu.memory_space<smem>>) -> (i32, i32) {
    %c0_i32 = arith.constant 0 : i32
    %c0_i32_0 = arith.constant 0 : i32
    return %arg0, %c0_i32 : i32, i32
  }
  func.func @transform_1(%arg0: i32, %arg1: i32, %arg2: memref<2xi32, #tpu.memory_space<smem>>, %arg3: memref<2xi32, #tpu.memory_space<smem>>, %arg4: memref<2xi32, #tpu.memory_space<smem>>) -> (i32, i32) {
    %0 = arith.index_cast %arg0 : i32 to index
    %1 = memref.load %arg2[%0] : memref<2xi32, #tpu.memory_space<smem>>
    %2 = arith.minsi %arg1, %1 : i32
    %c0_i32 = arith.constant 0 : i32
    return %arg0, %2 : i32, i32
  }
  func.func @transform_2(%arg0: i32, %arg1: i32, %arg2: memref<2xi32, #tpu.memory_space<smem>>, %arg3: memref<2xi32, #tpu.memory_space<smem>>, %arg4: memref<2xi32, #tpu.memory_space<smem>>) -> (i32, i32) {
    %c0_i32 = arith.constant 0 : i32
    %c0_i32_0 = arith.constant 0 : i32
    return %arg0, %c0_i32 : i32, i32
  }
}

</mosaic_0001>

<llo_original>
// kernel: tpu_custom_call.1
$region0: #{tpu_custom_call.1}
  #allocation0 [shape = 'u32[]', space=smem, size = 0x4, offset = 0x4, fixed_abs, tag = 'smem constant byte address 0x4 - core index']
  #allocation1 [shape = 'u32[144,128]{1,0:T(1,128)}', space=vmem, size = 0x12000, scoped, tag = 'internal scratch']
  #allocation2 [shape = 's32[1]{0}', space=sflag, size = 0x4, scoped, tag = 'scoped memory for tpu_custom_call.1']
  #allocation3 [shape = 'u8[512]{0}', space=smem, size = 0x200, scoped, tag = 'prefetched SMEM operand 0']
  #allocation4 [shape = 'u8[512]{0}', space=smem, size = 0x200, scoped, tag = 'prefetched SMEM operand 1']
  #allocation5 [shape = 'u8[512]{0}', space=smem, size = 0x200, scoped, tag = 'prefetched SMEM operand 2']
  %s0 = inlined_call_operand.vmem [shape: s32[2], index: 0, kind: input, shape index: {}]
  %s1 = inlined_call_operand.vmem [shape: s32[2], index: 1, kind: input, shape index: {}]
  %s2 = inlined_call_operand.vmem [shape: s32[2], index: 2, kind: input, shape index: {}]
  %s3 = inlined_call_operand.vmem [shape: s32[32,1], index: 3, kind: input, shape index: {}]
  %s4 = inlined_call_operand.vmem [shape: bf16[20,300], index: 4, kind: input, shape index: {}]
  %s5 = inlined_call_operand.vmem [shape: f32[32,1], index: 5, kind: output, shape index: {}]
  %s6 = sld [smem:[#allocation0]]
  $region101: #{tpu_custom_call.1} parent=0
    _
  %s8 = ssub.s32 1, %s6
  %s9 = scalar_select 0, %s8, %s6
  %s10 = sshll.u32 %s0, 4
  %s11 = int_to_ptr.vmem [resolvable:$true] %s10
  %13 = dma.vmem_to_smem %s11, 16, [#allocation3], [#allocation2]
  %s14 = sshll.u32 %s1, 4
  %s15 = int_to_ptr.vmem [resolvable:$true] %s14
  %17 = dma.vmem_to_smem %s15, 16, [#allocation4], [#allocation2]
  %s18 = sshll.u32 %s2, 4
  %s19 = int_to_ptr.vmem [resolvable:$true] %s18
  %21 = dma.vmem_to_smem %s19, 16, [#allocation5], [#allocation2]
  %22 = dma.done [#allocation2], 48
  %23 = sfence
  $region1: #{tpu_custom_call.1} parent=0
    #allocation6 [shape = 'u8[8192]{0}', space=vmem, size = 0x2000, scoped, tag = 'input window, operand 4']
    loop: start=0, step=1, limit=8
    $region2: #{tpu_custom_call.1} parent=1 // loop_pre_header
      _
    $region3: #{tpu_custom_call.1} parent=1 // loop_header
      %s25 = sphi 0, %s29
      %p26 = scmp.ge.s32.totalorder %s25, 8
      %s32 = sphi 0, %s44
      %s33 = sphi 0, %s40
      %s34 = sphi 0, %s32
      %s35 = sphi 0, %s33
      %s36 = sphi 0, %s34
      %s37 = sphi 0, %s35
      %s47 = sphi 0, %s49
      %s50 = sphi 0, %s47
      %s51 = sphi 0, %s50
      %s67 = sphi 0, %s51
      %s81 = sphi 0, %s83
      %s84 = sphi 0, %s81
      %s85 = sphi 0, %s84
      %s101 = sphi 0, %s85
      %s107 = sphi 0, %s109
      %s110 = sphi 0, %s107
      %s111 = sphi 0, %s110
      %s127 = sphi 0, %s111
    $region4: #{tpu_custom_call.1} parent=1 // loop_header_branch
      %28 = sbr.rel (%p26) target = $region8
    $region5: #{tpu_custom_call.1} parent=1 // loop_body
      %s30 = ssub.s32 %s25, 1
      %s31 = ssub.s32 %s25, 2
      %s38 = sadd.s32 1, %s33
      %p39 = scmp.ge.s32.totalorder %s38, 3
      %s40 = scalar_select %p39, 0, %s38
      %s41 = sadd.s32 1, %s32
      %s42 = scalar_select %p39, %s41, %s32
      %p43 = scmp.ge.s32.totalorder %s42, 2
      %s44 = scalar_select %p43, 0, %s42
      %s45 = ssub.s32 %s32, %s44
      %p46 = scmp.eq.s32.totalorder %s45, 0
      %s48 = sadd.s32 %s47, 1
      %s49 = scalar_select %p46, %s47, %s48
      %p52 = pneg %p46
      %p53 = scmp.eq.s32.totalorder %s25, 5
      %p54 = por %p52, %p53
      %p55 = scmp.ne.s32.totalorder %s47, %s50
      %p56 = scmp.eq.s32.totalorder %s25, 0
      %p57 = por %p55, %p56
      %p58 = scmp.ne.s32.totalorder %s47, %s50
      %p59 = scmp.eq.s32.totalorder %s30, 5
      %p60 = por %p58, %p59
      %p61 = scmp.ne.s32.totalorder %s50, %s51
      %p62 = scmp.eq.s32.totalorder %s30, 0
      %p63 = por %p61, %p62
      %p64 = scmp.ne.s32.totalorder %s50, %s51
      %p65 = scmp.eq.s32.totalorder %s31, 5
      %p66 = por %p64, %p65
      %p68 = scmp.ne.s32.totalorder %s51, %s67
      %p69 = scmp.eq.s32.totalorder %s31, 0
      %p70 = por %p68, %p69
      %s71 = sld [smem:[#allocation3 + %s32]]
      %p72 = scmp.lt.s32.totalorder %s33, %s71
      %s73 = scalar_select %p72, %s33, %s71
      %s74 = sld [smem:[#allocation3 + %s44]]
      %p75 = scmp.lt.s32.totalorder %s40, %s74
      %s76 = scalar_select %p75, %s40, %s74
      %s77 = ssub.s32 %s32, %s44
      %s78 = ssub.s32 %s73, %s76
      %s79 = sor.u32 %s77, %s78
      %p80 = scmp.eq.s32.totalorder %s79, 0
      %s82 = sadd.s32 %s81, 1
      %s83 = scalar_select %p80, %s81, %s82
      %p86 = pneg %p80
      %p87 = scmp.eq.s32.totalorder %s25, 5
      %p88 = por %p86, %p87
      %p89 = scmp.ne.s32.totalorder %s81, %s84
      %p90 = scmp.eq.s32.totalorder %s25, 0
      %p91 = por %p89, %p90
      %p92 = scmp.ne.s32.totalorder %s81, %s84
      %p93 = scmp.eq.s32.totalorder %s30, 5
      %p94 = por %p92, %p93
      %p95 = scmp.ne.s32.totalorder %s84, %s85
      %p96 = scmp.eq.s32.totalorder %s30, 0
      %p97 = por %p95, %p96
      %p98 = scmp.ne.s32.totalorder %s84, %s85
      %p99 = scmp.eq.s32.totalorder %s31, 5
      %p100 = por %p98, %p99
      %p102 = scmp.ne.s32.totalorder %s85, %s101
      %p103 = scmp.eq.s32.totalorder %s31, 0
      %p104 = por %p102, %p103
      %s105 = ssub.s32 %s32, %s44
      %p106 = scmp.eq.s32.totalorder %s105, 0
      %s108 = sadd.s32 %s107, 1
      %s109 = scalar_select %p106, %s107, %s108
      %p112 = pneg %p106
      %p113 = scmp.eq.s32.totalorder %s25, 5
      %p114 = por %p112, %p113
      %p115 = scmp.ne.s32.totalorder %s107, %s110
      %p116 = scmp.eq.s32.totalorder %s25, 0
      %p117 = por %p115, %p116
      %p118 = scmp.ne.s32.totalorder %s107, %s110
      %p119 = scmp.eq.s32.totalorder %s30, 5
      %p120 = por %p118, %p119
      %p121 = scmp.ne.s32.totalorder %s110, %s111
      %p122 = scmp.eq.s32.totalorder %s30, 0
      %p123 = por %p121, %p122
      %p124 = scmp.ne.s32.totalorder %s110, %s111
      %p125 = scmp.eq.s32.totalorder %s31, 5
      %p126 = por %p124, %p125
      %p128 = scmp.ne.s32.totalorder %s111, %s127
      %p129 = scmp.eq.s32.totalorder %s31, 0
      %p130 = por %p128, %p129
      %p131 = scmp.le.s32.totalorder 1, %s25
      %p132 = scmp.lt.s32.totalorder %s25, 7
      %p133 = pnand %p131, %p132
      %p134 = pneg %p133
      // Predicated region
      $region9: #{tpu_custom_call.1} parent=5 // pred_check
        _
      $region10: #{tpu_custom_call.1} parent=5 // pred_check_branch
        %136 = sbr.rel (%p133) target = $region12
      $region11: #{tpu_custom_call.1} parent=5 // pred_region
        %s137 = ssub.s32 %s25, 1
      $region12: #{tpu_custom_call.1} parent=5 // pred_fallthru
        _
      %p138 = scmp.lt.s32.totalorder %s25, 6
      // Predicated region
      $region13: #{tpu_custom_call.1} parent=5 // pred_check
        %p139 = pneg %p138
      $region14: #{tpu_custom_call.1} parent=5 // pred_check_branch
        %141 = sbr.rel (%p139) target = $region16
      $region15: #{tpu_custom_call.1} parent=5 // pred_region
        // Predicated region
        $region17: #{tpu_custom_call.1} parent=15 // pred_check
          %p142 = pneg %p57
        $region18: #{tpu_custom_call.1} parent=15 // pred_check_branch
          %144 = sbr.rel (%p142) target = $region20
        $region19: #{tpu_custom_call.1} parent=15 // pred_region
          %s145 = smul.u32 2, %s32
          %p146 = scmp.lt.s32.totalorder %s145, 3
          %s147 = scalar_select %p146, %s145, 3
          %s148 = smul.addr %s147, 8
          %s149 = scalar_lea.vmem %s3, %s148
          %s150 = smul.u32 2, %s32
        $region20: #{tpu_custom_call.1} parent=15 // pred_fallthru
          _
        // Predicated region
        $region21: #{tpu_custom_call.1} parent=15 // pred_check
          %p151 = pneg %p91
        $region22: #{tpu_custom_call.1} parent=15 // pred_check_branch
          %153 = sbr.rel (%p151) target = $region24
        $region23: #{tpu_custom_call.1} parent=15 // pred_region
          %s154 = sand.u32 %s81, 1
          %s155 = sand.u32 %s81, 1
          %s156 = smul.addr %s155, 8
          %s157 = scalar_lea.vmem [#allocation6], %s156
          %s158 = sld [smem:[#allocation3 + %s32]]
          %p159 = scmp.lt.s32.totalorder %s33, %s158
          %s160 = scalar_select %p159, %s33, %s158
          %s161 = smul.u32 2, %s32
          %s162 = ssub.s32 3, %s161
          %p163 = scmp.lt.s32.totalorder %s162, 2
          %s164 = scalar_select %p163, %s162, 2
          %s165 = smul.u32 64, %s164
          %p166 = scmp.ne.s32.totalorder 0, %s165
          %s167 = smul.addr %s161, 3
          %s168 = sadd.s32 %s160, %s167
          %s169 = smul.addr %s168, 4
          %s170 = scalar_lea.vmem %s4, %s169
          // Predicated region
          $region25: #{tpu_custom_call.1} parent=23 // pred_check
            %p171 = pneg %p166
          $region26: #{tpu_custom_call.1} parent=23 // pred_check_branch
            %173 = sbr.rel (%p171) target = $region28
          $region27: #{tpu_custom_call.1} parent=23 // pred_region
            // Predicated region
            $region29: #{tpu_custom_call.1} parent=27 // pred_check
              _
            $region30: #{tpu_custom_call.1} parent=27 // pred_check_branch
              %175 = sbr.rel target = $region32
            $region31: #{tpu_custom_call.1} parent=27 // pred_region
              // Predicated region
              $region51: #{tpu_custom_call.1} parent=31 // pred_check
                _
              $region52: #{tpu_custom_call.1} parent=31 // pred_check_branch
                %226 = sbr.rel (0) target = $region54
              $region53: #{tpu_custom_call.1} parent=31 // pred_region
                %s228 = sshrl.u32 %s164, 1
                // While loop
                $region55: #{tpu_custom_call.1} parent=53 // loop_pre_header
                  _
                $region56: #{tpu_custom_call.1} parent=53 // loop_header
                  %s230 = sphi 0, %s232
                  %p231 = scmp.ge.s32.totalorder %s230, %s228
                  %s235 = sphi 0, %s244
                  %s236 = sphi %s170, %s247
                  %s237 = sphi %s157, %s248
                $region57: #{tpu_custom_call.1} parent=53 // loop_header_branch
                  %234 = sbr.rel (%p231) target = $region61
                $region58: #{tpu_custom_call.1} parent=53 // loop_body
                  %v238 = vld [vmem:[%s236] sm:$0xf]
                  %239 = vst [vmem:[%s237] sm:$0xf] %v238
                  %v240 = vld [vmem:[%s236 + $0xc] sm:$0xf]
                  %241 = vst [vmem:[%s237 + $0x4] sm:$0xf] %v240
                  %s242 = sadd.s32 1, %s235
                  %p243 = scmp.ge.s32.totalorder %s242, %s228
                  %s244 = scalar_select %p243, 0, %s242
                  %s245 = smul.u32 %s244, 24
                  %s246 = smul.u32 %s244, 8
                  %s247 = scalar_lea.vmem %s170, %s245
                  %s248 = scalar_lea.vmem %s157, %s246 [#allocation6]
                $region59: #{tpu_custom_call.1} parent=53 // loop_footer
                  %s232 = sadd.s32 %s230, 1
                $region60: #{tpu_custom_call.1} parent=53 // loop_footer_branch
                  %229 = sbr.rel target = $region56
                $region61: #{tpu_custom_call.1} parent=53 // loop_exit
                  _
                %s249 = sshrl.u32 %s164, 1
                %s250 = sand.u32 %s164, 1
                %s251 = smul.u32 %s249, 2
                %s252 = smul.u32 12, %s251
                %s253 = scalar_lea.vmem %s170, %s252
                %s254 = smul.u32 4, %s251
                %s255 = scalar_lea.vmem %s157, %s254 [#allocation6]
                // While loop
                $region62: #{tpu_custom_call.1} parent=53 // loop_pre_header
                  _
                $region63: #{tpu_custom_call.1} parent=53 // loop_header
                  %s257 = sphi 0, %s259
                  %p258 = scmp.ge.s32.totalorder %s257, %s250
                  %s262 = sphi 0, %s269
                  %s263 = sphi %s253, %s272
                  %s264 = sphi %s255, %s273
                $region64: #{tpu_custom_call.1} parent=53 // loop_header_branch
                  %261 = sbr.rel (%p258) target = $region68
                $region65: #{tpu_custom_call.1} parent=53 // loop_body
                  %v265 = vld [vmem:[%s263] sm:$0xf]
                  %266 = vst [vmem:[%s264] sm:$0xf] %v265
                  %s267 = sadd.s32 1, %s262
                  %p268 = scmp.ge.s32.totalorder %s267, %s250
                  %s269 = scalar_select %p268, 0, %s267
                  %s270 = smul.u32 %s269, 12
                  %s271 = smul.u32 %s269, 4
                  %s272 = scalar_lea.vmem %s253, %s270
                  %s273 = scalar_lea.vmem %s255, %s271 [#allocation6]
                $region66: #{tpu_custom_call.1} parent=53 // loop_footer
                  %s259 = sadd.s32 %s257, 1
                $region67: #{tpu_custom_call.1} parent=53 // loop_footer_branch
                  %256 = sbr.rel target = $region63
                $region68: #{tpu_custom_call.1} parent=53 // loop_exit
                  _
              $region54: #{tpu_custom_call.1} parent=31 // pred_fallthru
                _
            $region32: #{tpu_custom_call.1} parent=27 // pred_fallthru
              _
            // Predicated region
            $region33: #{tpu_custom_call.1} parent=27 // pred_check
              _
            $region34: #{tpu_custom_call.1} parent=27 // pred_check_branch
              %177 = sbr.rel (0) target = $region36
            $region35: #{tpu_custom_call.1} parent=27 // pred_region
              %s179 = sshrl.u32 %s164, 1
              // While loop
              $region37: #{tpu_custom_call.1} parent=35 // loop_pre_header
                _
              $region38: #{tpu_custom_call.1} parent=35 // loop_header
                %s181 = sphi 0, %s183
                %p182 = scmp.ge.s32.totalorder %s181, %s179
                %s186 = sphi 0, %s195
                %s187 = sphi %s170, %s198
                %s188 = sphi %s157, %s199
              $region39: #{tpu_custom_call.1} parent=35 // loop_header_branch
                %185 = sbr.rel (%p182) target = $region43
              $region40: #{tpu_custom_call.1} parent=35 // loop_body
                %v189 = vld [vmem:[%s187] sm:$0xf]
                %190 = vst [vmem:[%s188] sm:$0xf] %v189
                %v191 = vld [vmem:[%s187 + $0xc] sm:$0xf]
                %192 = vst [vmem:[%s188 + $0x4] sm:$0xf] %v191
                %s193 = sadd.s32 1, %s186
                %p194 = scmp.ge.s32.totalorder %s193, %s179
                %s195 = scalar_select %p194, 0, %s193
                %s196 = smul.u32 %s195, 24
                %s197 = smul.u32 %s195, 8
                %s198 = scalar_lea.vmem %s170, %s196
                %s199 = scalar_lea.vmem %s157, %s197 [#allocation6]
              $region41: #{tpu_custom_call.1} parent=35 // loop_footer
                %s183 = sadd.s32 %s181, 1
              $region42: #{tpu_custom_call.1} parent=35 // loop_footer_branch
                %180 = sbr.rel target = $region38
              $region43: #{tpu_custom_call.1} parent=35 // loop_exit
                _
              %s200 = sshrl.u32 %s164, 1
              %s201 = sand.u32 %s164, 1
              %s202 = smul.u32 %s200, 2
              %s203 = smul.u32 12, %s202
              %s204 = scalar_lea.vmem %s170, %s203
              %s205 = smul.u32 4, %s202
              %s206 = scalar_lea.vmem %s157, %s205 [#allocation6]
              // While loop
              $region44: #{tpu_custom_call.1} parent=35 // loop_pre_header
                _
              $region45: #{tpu_custom_call.1} parent=35 // loop_header
                %s208 = sphi 0, %s210
                %p209 = scmp.ge.s32.totalorder %s208, %s201
                %s213 = sphi 0, %s220
                %s214 = sphi %s204, %s223
                %s215 = sphi %s206, %s224
              $region46: #{tpu_custom_call.1} parent=35 // loop_header_branch
                %212 = sbr.rel (%p209) target = $region50
              $region47: #{tpu_custom_call.1} parent=35 // loop_body
                %v216 = vld [vmem:[%s214] sm:$0xf]
                %217 = vst [vmem:[%s215] sm:$0xf] %v216
                %s218 = sadd.s32 1, %s213
                %p219 = scmp.ge.s32.totalorder %s218, %s201
                %s220 = scalar_select %p219, 0, %s218
                %s221 = smul.u32 %s220, 12
                %s222 = smul.u32 %s220, 4
                %s223 = scalar_lea.vmem %s204, %s221
                %s224 = scalar_lea.vmem %s206, %s222 [#allocation6]
              $region48: #{tpu_custom_call.1} parent=35 // loop_footer
                %s210 = sadd.s32 %s208, 1
              $region49: #{tpu_custom_call.1} parent=35 // loop_footer_branch
                %207 = sbr.rel target = $region45
              $region50: #{tpu_custom_call.1} parent=35 // loop_exit
                _
            $region36: #{tpu_custom_call.1} parent=27 // pred_fallthru
              _
          $region28: #{tpu_custom_call.1} parent=23 // pred_fallthru
            _
          %274 = vnop
        $region24: #{tpu_custom_call.1} parent=15 // pred_fallthru
          _
      $region16: #{tpu_custom_call.1} parent=5 // pred_fallthru
        _
      %p275 = scmp.le.s32.totalorder 1, %s25
      %p276 = scmp.lt.s32.totalorder %s25, 7
      %p277 = pnand %p275, %p276
      %p278 = pneg %p277
      // Predicated region
      $region69: #{tpu_custom_call.1} parent=5 // pred_check
        _
      $region70: #{tpu_custom_call.1} parent=5 // pred_check_branch
        %280 = sbr.rel (%p277) target = $region72
      $region71: #{tpu_custom_call.1} parent=5 // pred_region
        %s281 = ssub.s32 %s25, 1
        %s282 = sand.u32 %s84, 1
        %s283 = sand.u32 %s84, 1
        %s284 = smul.addr %s283, 8
        %s285 = scalar_lea.vmem [#allocation6], %s284
        // Predicated region
        $region73: #{tpu_custom_call.1} parent=71 // pred_check
          %p286 = pneg %p97
        $region74: #{tpu_custom_call.1} parent=71 // pred_check_branch
          %288 = sbr.rel (%p286) target = $region76
        $region75: #{tpu_custom_call.1} parent=71 // pred_region
          _
        $region76: #{tpu_custom_call.1} parent=71 // pred_fallthru
          _
        %s289 = smul.u32 2, %s34
        %p290 = scmp.lt.s32.totalorder %s289, 3
        %s291 = scalar_select %p290, %s289, 3
        %s292 = smul.addr %s291, 8
        %s293 = scalar_lea.vmem %s3, %s292
        %p294 = pneg %p63
        %p295 = pneg %p60
        %s296 = sand.u32 %s84, 1
        %s297 = sand.u32 %s84, 1
        %s298 = smul.addr %s297, 8
        %s299 = scalar_lea.vmem [#allocation6], %s298
        %p300 = pneg %p97
        %p301 = pneg %p94
        %p302 = pneg %p123
        %p303 = pneg %p120
        %s304 = smul.u32 2, %s34
        %p305 = scmp.lt.s32.totalorder %s304, 3
        %s306 = scalar_select %p305, %s304, 3
        %s307 = smul.addr %s306, 8
        %s308 = scalar_lea.vmem %s5, %s307
        %s309 = smul.u32 2, %s34
        %p310 = scmp.lt.s32.totalorder %s309, 3
        %s311 = scalar_select %p310, %s309, 3
        %s312 = smul.addr %s311, 8
        %s313 = scalar_lea.vmem %s3, %s312
        %s314 = smul.u32 2, %s34
        %s315 = sld [smem:[#allocation3 + %s34]]
        %p316 = scmp.lt.s32.totalorder %s35, %s315
        %s317 = scalar_select %p316, %s35, %s315
        %s318 = smul.u32 2, %s34
        %s319 = ssub.s32 3, %s318
        %p320 = scmp.lt.s32.totalorder %s319, 2
        %s321 = scalar_select %p320, %s319, 2
        %s322 = smul.u32 64, %s321
        %s323 = smul.u32 2, %s34
        %p324 = scmp.lt.s32.totalorder %s323, 3
        %s325 = scalar_select %p324, %s323, 3
        %s326 = smul.addr %s325, 8
        %s327 = scalar_lea.vmem %s5, %s326
        %s328 = smul.u32 2, %s34
        %p330 = scmp.eq.s32.totalorder %s35, 0
        // Predicated region
        $region77: #{tpu_custom_call.1} parent=71 // pred_check
          %p331 = pneg %p330
        $region78: #{tpu_custom_call.1} parent=71 // pred_check_branch
          %333 = sbr.rel (%p331) target = $region80
        $region79: #{tpu_custom_call.1} parent=71 // pred_region
          %vm334 = vcmask 7168
          %335 = vst.msk [vmem:[%s327] sm:$0xff] %vm334, -inf
          %336 = vst.msk [vmem:[%s327 + $0x8] sm:$0xff] %vm334, -inf
        $region80: #{tpu_custom_call.1} parent=71 // pred_fallthru
          _
        %s337 = sld [smem:[#allocation4 + %s34]]
        %s338 = sld [smem:[#allocation5 + %s34]]
        %s339 = smul.u32 %s35, 128
        %p340 = scmp.lt.s32.totalorder %s339, %s337
        %s341 = sadd.s32 %s35, 1
        %s342 = smul.u32 %s341, 128
        %p343 = scmp.ge.s32.totalorder %s338, %s342
        %p344 = pnand %p340, %p343
        %p345 = pneg %p344
        // Predicated region
        $region81: #{tpu_custom_call.1} parent=71 // pred_check
          _
        $region82: #{tpu_custom_call.1} parent=71 // pred_check_branch
          %347 = sbr.rel (%p344) target = $region84
        $region83: #{tpu_custom_call.1} parent=71 // pred_region
          %v348 = vld [vmem:[%s285] sm:$0xf]
          %v349 = vld [vmem:[%s285 + $0x4] sm:$0xf]
          %v352 = vunpack.c.l.b16 %v348
          %v353 = vunpack.c.l.b16 %v349
          %v354 = vpack.c.b16 %v353, %v352
          %356 = vmax.xlane.bf16.xlu0 %v354
          %v357 = vpop.xlane.xlu0 %356
          %v358 = vld [vmem:[%s327] sm:$0xff]
          %v359 = vld [vmem:[%s327 + $0x8] sm:$0xff]
          %v360 = vunpack.c.l.bf16 %v357
          %v361 = vunpack.c.h.bf16 %v357
          %v362 = vmax.f32 %v358, %v360
          %v363 = vmax.f32 %v359, %v361
          %vm364 = vcmask 7168
          %365 = vst.msk [vmem:[%s327] sm:$0xff] %vm364, %v362
          %366 = vst.msk [vmem:[%s327 + $0x8] sm:$0xff] %vm364, %v363
        $region84: #{tpu_custom_call.1} parent=71 // pred_fallthru
          _
        %p367 = scmp.lt.s32.totalorder %s338, %s342
        %p368 = pnand %p340, %p367
        %p369 = pneg %p368
        // Predicated region
        $region85: #{tpu_custom_call.1} parent=71 // pred_check
          _
        $region86: #{tpu_custom_call.1} parent=71 // pred_check_branch
          %371 = sbr.rel (%p368) target = $region88
        $region87: #{tpu_custom_call.1} parent=71 // pred_region
          %v372 = vld [vmem:[%s285] sm:$0xf]
          %v373 = vld [vmem:[%s285 + $0x4] sm:$0xf]
          %v374 = vlaneseq
          %v375 = vand.u32 %v374, 127
          %v376 = vstv %s339
          %v377 = vadd.s32 %v375, %v376
          %v378 = vld [vmem:[%s313] sm:$0xff]
          %v379 = vld [vmem:[%s313 + $0x8] sm:$0xff]
          %380 = vset.pattern.permute.xlu0 0
          %381 = vperm.xlu0 %380, %v378
          %v382 = vpop.permute.xlu0 %381
          %383 = vset.pattern.permute.xlu0 0
          %384 = vperm.xlu0 %383, %v379
          %v385 = vpop.permute.xlu0 %384
          %vm386 = vcmp.lt.s32.totalorder %v377, %v382
          %vm387 = vcmp.lt.s32.totalorder %v377, %v385
          %vm388 = vmpackc.low %vm386, %vm386
          %vm389 = vmpackc.low %vm387, %vm387
          %v390 = vsel %vm388, %v372, 4286644096
          %v391 = vsel %vm389, %v373, 4286644096
          %v394 = vunpack.c.l.b16 %v390
          %v395 = vunpack.c.l.b16 %v391
          %v396 = vpack.c.b16 %v395, %v394
          %398 = vmax.xlane.bf16.xlu0 %v396
          %v399 = vpop.xlane.xlu0 %398
          %v400 = vld [vmem:[%s327] sm:$0xff]
          %v401 = vld [vmem:[%s327 + $0x8] sm:$0xff]
          %v402 = vunpack.c.l.bf16 %v399
          %v403 = vunpack.c.h.bf16 %v399
          %v404 = vmax.f32 %v400, %v402
          %v405 = vmax.f32 %v401, %v403
          %vm406 = vcmask 7168
          %407 = vst.msk [vmem:[%s327] sm:$0xff] %vm406, %v404
          %408 = vst.msk [vmem:[%s327 + $0x8] sm:$0xff] %vm406, %v405
        $region88: #{tpu_custom_call.1} parent=71 // pred_fallthru
          _
        %s409 = smul.u32 2, %s34
        %p410 = scmp.lt.s32.totalorder %s409, 3
        %s411 = scalar_select %p410, %s409, 3
        %s412 = smul.addr %s411, 8
        %s413 = scalar_lea.vmem %s5, %s412
        // Predicated region
        $region89: #{tpu_custom_call.1} parent=71 // pred_check
          %p414 = pneg %p120
        $region90: #{tpu_custom_call.1} parent=71 // pred_check_branch
          %416 = sbr.rel (%p414) target = $region92
        $region91: #{tpu_custom_call.1} parent=71 // pred_region
          %s417 = smul.u32 2, %s34
        $region92: #{tpu_custom_call.1} parent=71 // pred_fallthru
          _
      $region72: #{tpu_custom_call.1} parent=5 // pred_fallthru
        _
      %p418 = scmp.le.s32.totalorder 2, %s25
      // Predicated region
      $region93: #{tpu_custom_call.1} parent=5 // pred_check
        %p419 = pneg %p418
      $region94: #{tpu_custom_call.1} parent=5 // pred_check_branch
        %421 = sbr.rel (%p419) target = $region96
      $region95: #{tpu_custom_call.1} parent=5 // pred_region
        %s422 = ssub.s32 %s25, 2
        // Predicated region
        $region97: #{tpu_custom_call.1} parent=95 // pred_check
          %p423 = pneg %p126
        $region98: #{tpu_custom_call.1} parent=95 // pred_check_branch
          %425 = sbr.rel (%p423) target = $region100
        $region99: #{tpu_custom_call.1} parent=95 // pred_region
          %s426 = smul.u32 2, %s36
          %p427 = scmp.lt.s32.totalorder %s426, 3
          %s428 = scalar_select %p427, %s426, 3
          %s429 = smul.addr %s428, 8
          %s430 = scalar_lea.vmem %s5, %s429
        $region100: #{tpu_custom_call.1} parent=95 // pred_fallthru
          _
      $region96: #{tpu_custom_call.1} parent=5 // pred_fallthru
        _
    $region6: #{tpu_custom_call.1} parent=1 // loop_footer
      %s29 = sadd.s32 1, %s25
    $region7: #{tpu_custom_call.1} parent=1 // loop_footer_branch
      %24 = sbr.rel target = $region3
    $region8: #{tpu_custom_call.1} parent=1 // loop_exit
      _

</llo_original>
